<compile_context>
chip_gen: v7x
topology: tpu7x:2x2x1
jax: 0.10.0
libtpu: 0.0.40
codegen_flags: <defaults>
</compile_context>

<pallas_src>
import jax
import jax.numpy as jnp
from jax.experimental import pallas as pl
from jax.experimental.pallas import tpu as pltpu


# ----------------------------- kernels ------------------------------------ #

def _proj_kernel(seq_ref, w1a_ref, w1b_ref, b1_ref, whe_ref, bhe_ref,
                 a_ref, bm_ref, he_ref):
    # seq_ref: (1, Tp, H); outputs: A (1, Tp, 2H), Bm (1, Tp, 2H), heads (1, Tp, P)
    x = seq_ref[0]                                                  # (Tp, H)
    a_ref[0] = (jnp.dot(x, w1a_ref[...], preferred_element_type=jnp.float32)
                + b1_ref[...])                                      # b1 folded once
    bm_ref[0] = jnp.dot(x, w1b_ref[...], preferred_element_type=jnp.float32)
    he_ref[0] = (jnp.dot(x, whe_ref[...], preferred_element_type=jnp.float32)
                 + bhe_ref[...])                                    # start||end (padded)


def _span_kernel(a_ref, bm_ref, w2_ref, b2_ref, out_ref, acc_ref):
    # a_ref: (1, Ti, C)  b1 already folded in
    # bm_ref: (1, Tj, C)
    # w2_ref: (1, C) lane chunk of classifier2 weight
    # b2_ref: (1, 1) scalar in SMEM
    # out_ref: (1, Ti, Tj); acc_ref: (Ti, Tj) f32 VMEM scratch
    c = pl.program_id(3)

    @pl.when(c == 0)
    def _init():
        acc_ref[...] = jnp.zeros_like(acc_ref)

    a = a_ref[0]                                                    # (Ti, C)
    bm = bm_ref[0]                                                  # (Tj, C)
    # exact erf GELU == torch F.gelu default
    h = jax.nn.gelu(a[:, None, :] + bm[None, :, :], approximate=False)  # (Ti,Tj,C)
    acc_ref[...] += jnp.sum(h * w2_ref[...], axis=-1)               # chunked reduce

    @pl.when(c == pl.num_programs(3) - 1)
    def _finalize():
        out_ref[0] = acc_ref[...] + b2_ref[0, 0]


# ----------------------------- wrapper ------------------------------------- #

def _pick_tile(n, pref, align):
    """Largest tile <= pref that divides n and is a multiple of align, else n."""
    if n <= pref:
        return n
    t = (pref // align) * align
    while t >= align:
        if n % t == 0:
            return t
        t -= align
    return n   # TODO(synk): pad S / 2H to tile multiples for odd production sizes


def bert_mrc_forward(seq, ws, bs, we, be, w1, b1, w2, b2):
    """seq: (B, S, H) f32. Weights stored (in_features, out_features).
    Returns (start_logits (B,S,T), end_logits (B,S,T), span_logits (B,S,S))."""
    B, S, H = seq.shape
    T = ws.shape[1]
    H2 = 2 * H

    # Heads fused: concat ws||we and zero-pad to a lane-dense width (unmasked vst).
    P = max(128, ((2 * T + 127) // 128) * 128)
    whe = jnp.zeros((H, P), jnp.float32).at[:, :T].set(ws).at[:, T:2 * T].set(we)
    bhe = jnp.zeros((1, P), jnp.float32).at[:, :T].set(bs).at[:, T:2 * T].set(be)
    w1a = w1[:H]            # (H, 2H): acts on start-token half of the concat
    w1b = w1[H:]            # (H, 2H): acts on end-token half
    w2t = w2.T              # (1, 2H)

    # ---- kernel 1: projection + heads (single pass over seq) ---- #
    Tp = _pick_tile(S, 256, 8)
    a_proj, b_proj, heads = pl.pallas_call(
        _proj_kernel,
        out_shape=(jax.ShapeDtypeStruct((B, S, H2), jnp.float32),
                   jax.ShapeDtypeStruct((B, S, H2), jnp.float32),
                   jax.ShapeDtypeStruct((B, S, P), jnp.float32)),
        grid_spec=pltpu.PrefetchScalarGridSpec(
            num_scalar_prefetch=0,
            grid=(B, S // Tp),
            in_specs=[pl.BlockSpec((1, Tp, H), lambda b, i: (b, i, 0)),
                      pl.BlockSpec((H, H2), lambda b, i: (0, 0)),
                      pl.BlockSpec((H, H2), lambda b, i: (0, 0)),
                      pl.BlockSpec((1, H2), lambda b, i: (0, 0)),
                      pl.BlockSpec((H, P), lambda b, i: (0, 0)),
                      pl.BlockSpec((1, P), lambda b, i: (0, 0))],
            out_specs=[pl.BlockSpec((1, Tp, H2), lambda b, i: (b, i, 0)),
                       pl.BlockSpec((1, Tp, H2), lambda b, i: (b, i, 0)),
                       pl.BlockSpec((1, Tp, P), lambda b, i: (b, i, 0))]),
        compiler_params=pltpu.CompilerParams(
            dimension_semantics=("parallel", "parallel")),
    )(seq, w1a, w1b, b1, whe, bhe)

    # ---- kernel 2: tiled pairwise span classifier ---- #
    Ti = _pick_tile(S, 64, 8)        # output sublane tile
    Tj = _pick_tile(S, 256, 128)     # output lane tile (lane-dense stores)
    C = _pick_tile(H2, 256, 128)     # 2H reduction chunk
    span = pl.pallas_call(
        _span_kernel,
        out_shape=jax.ShapeDtypeStruct((B, S, S), jnp.float32),
        grid_spec=pltpu.PrefetchScalarGridSpec(
            num_scalar_prefetch=0,
            grid=(B, S // Ti, S // Tj, H2 // C),
            in_specs=[pl.BlockSpec((1, Ti, C), lambda b, i, j, c: (b, i, c)),
                      pl.BlockSpec((1, Tj, C), lambda b, i, j, c: (b, j, c)),
                      pl.BlockSpec((1, C), lambda b, i, j, c: (0, c)),
                      pl.BlockSpec(memory_space=pltpu.MemorySpace.SMEM)],
            out_specs=pl.BlockSpec((1, Ti, Tj), lambda b, i, j, c: (b, i, j)),
            scratch_shapes=[pltpu.VMEM((Ti, Tj), jnp.float32)]),
        compiler_params=pltpu.CompilerParams(
            dimension_semantics=("parallel", "parallel", "parallel", "arbitrary"),
            vmem_limit_bytes=48 * 1024 * 1024),
    )(a_proj, b_proj, w2t, b2)

    start_logits = heads[:, :, :T]
    end_logits = heads[:, :, T:2 * T]
    return start_logits, end_logits, span


# ------------------------------ driver ------------------------------------- #

if __name__ == "__main__":
    B, S, H, NUM_TAG, VOCAB = 2, 8, 32, 4, 64
    key = jax.random.PRNGKey(0)
    ks = jax.random.split(key, 8)

    # Deterministic synthetic parameters (shapes from the module __init__).
    emb = jax.random.normal(ks[0], (VOCAB, H), jnp.float32) * 0.02       # stand-in encoder
    ws = jax.random.normal(ks[1], (H, NUM_TAG), jnp.float32) * 0.02      # start_fc
    bs = jnp.zeros((1, NUM_TAG), jnp.float32)
    we = jax.random.normal(ks[2], (H, NUM_TAG), jnp.float32) * 0.02      # end_fc
    be = jnp.zeros((1, NUM_TAG), jnp.float32)
    w1 = jax.random.normal(ks[3], (2 * H, 2 * H), jnp.float32) * 0.02    # classifier1
    b1 = jax.random.normal(ks[4], (1, 2 * H), jnp.float32) * 0.02
    w2 = jax.random.normal(ks[5], (2 * H, 1), jnp.float32) * 0.02        # classifier2
    b2 = jax.random.normal(ks[6], (1, 1), jnp.float32) * 0.02

    input_ids = jax.random.randint(ks[7], (B, S), 0, VOCAB)
    attention_mask = jnp.ones((B, S), jnp.int32)   # only used by the (skipped) encoder/loss

    # TODO(synk): BertModel.from_pretrained(path) cannot be loaded in-script;
    # the pretrained encoder is replaced by a deterministic embedding lookup.
    sequence_output = emb[input_ids].astype(jnp.float32)   # (B, S, H)
    # nn.Dropout(hidden_dropout_prob) and Dropout(mrc_dropout): identity in eval mode.

    start_logits, end_logits, span_logits = bert_mrc_forward(
        sequence_output, ws, bs, we, be, w1, b1, w2, b2)
    jax.block_until_ready((start_logits, end_logits, span_logits))

    # Plain-JAX reference for correctness.
    ref_start = sequence_output @ ws + bs
    ref_end = sequence_output @ we + be
    pair = jnp.concatenate(
        [jnp.broadcast_to(sequence_output[:, :, None, :], (B, S, S, H)),
         jnp.broadcast_to(sequence_output[:, None, :, :], (B, S, S, H))], axis=-1)
    h1 = jax.nn.gelu(pair @ w1 + b1[0], approximate=False)
    ref_span = (h1 @ w2)[..., 0] + b2[0, 0]

    assert jnp.allclose(start_logits, ref_start, atol=1e-4, rtol=1e-4)
    assert jnp.allclose(end_logits, ref_end, atol=1e-4, rtol=1e-4)
    assert jnp.allclose(span_logits, ref_span, atol=1e-4, rtol=1e-4)
    print("KERNEL_OK")
</pallas_src>

<mosaic_0001>
module attributes {stable_mosaic.version = 11 : i64} {
  func.func @_proj_kernel(%arg0: i32, %arg1: i32, %arg2: memref<1x8x32xf32, #tpu.memory_space<vmem>>, %arg3: memref<32x64xf32, #tpu.memory_space<vmem>>, %arg4: memref<32x64xf32, #tpu.memory_space<vmem>>, %arg5: memref<1x64xf32, #tpu.memory_space<vmem>>, %arg6: memref<32x128xf32, #tpu.memory_space<vmem>>, %arg7: memref<1x128xf32, #tpu.memory_space<vmem>>, %arg8: memref<1x8x64xf32, #tpu.memory_space<vmem>>, %arg9: memref<1x8x64xf32, #tpu.memory_space<vmem>>, %arg10: memref<1x8x128xf32, #tpu.memory_space<vmem>>) attributes {dimension_semantics = [#tpu.dimension_semantics<parallel>, #tpu.dimension_semantics<parallel>], iteration_bounds = array<i64: 2, 1>, scalar_prefetch = 0 : i64, scratch_operands = 0 : i64, tpu.core_type = #tpu.core_type<tc>, window_params = [{transform_indices = @transform_0, window_bounds = array<i64: 1, 8, 32>}, {pipeline_mode = #tpu.pipeline_mode<synchronous>, transform_indices = @transform_1, window_bounds = array<i64: 32, 64>}, {pipeline_mode = #tpu.pipeline_mode<synchronous>, transform_indices = @transform_2, window_bounds = array<i64: 32, 64>}, {pipeline_mode = #tpu.pipeline_mode<synchronous>, transform_indices = @transform_3, window_bounds = array<i64: 1, 64>}, {pipeline_mode = #tpu.pipeline_mode<synchronous>, transform_indices = @transform_4, window_bounds = array<i64: 32, 128>}, {pipeline_mode = #tpu.pipeline_mode<synchronous>, transform_indices = @transform_5, window_bounds = array<i64: 1, 128>}, {transform_indices = @transform_6, window_bounds = array<i64: 1, 8, 64>}, {transform_indices = @transform_7, window_bounds = array<i64: 1, 8, 64>}, {transform_indices = @transform_8, window_bounds = array<i64: 1, 8, 128>}]} {
    %c0 = arith.constant 0 : index
    %c0_0 = arith.constant 0 : index
    %c0_1 = arith.constant 0 : index
    %0 = vector.load %arg2[%c0, %c0_0, %c0_1] : memref<1x8x32xf32, #tpu.memory_space<vmem>>, vector<1x8x32xf32>
    %1 = vector.shape_cast %0 : vector<1x8x32xf32> to vector<8x32xf32>
    %c0_2 = arith.constant 0 : index
    %c0_3 = arith.constant 0 : index
    %2 = vector.load %arg3[%c0_2, %c0_3] : memref<32x64xf32, #tpu.memory_space<vmem>>, vector<32x64xf32>
    %cst = arith.constant dense<0.000000e+00> : vector<8x64xf32>
    %3 = tpu.matmul %1, %2, %cst {dimension_numbers = #tpu.dot_dimension_numbers<[1], [0], [0], [1], [0, 0, 1, 1], [], []>} : vector<8x32xf32>, vector<32x64xf32>, vector<8x64xf32> -> vector<8x64xf32>
    %c0_4 = arith.constant 0 : index
    %c0_5 = arith.constant 0 : index
    %4 = vector.load %arg5[%c0_4, %c0_5] : memref<1x64xf32, #tpu.memory_space<vmem>>, vector<1x64xf32>
    %5 = vector.broadcast %4 : vector<1x64xf32> to vector<8x64xf32>
    %6 = arith.addf %3, %5 : vector<8x64xf32>
    %c0_6 = arith.constant 0 : index
    %c0_7 = arith.constant 0 : index
    %c0_8 = arith.constant 0 : index
    %7 = vector.load %arg8[%c0_6, %c0_7, %c0_8] : memref<1x8x64xf32, #tpu.memory_space<vmem>>, vector<1x8x64xf32>
    %8 = vector.shape_cast %7 : vector<1x8x64xf32> to vector<8x64xf32>
    %9 = vector.shape_cast %6 : vector<8x64xf32> to vector<1x8x64xf32>
    tpu.vector_store %arg8[%c0_6, %c0_7, %c0_8], %9 {strides = array<i32>} : memref<1x8x64xf32, #tpu.memory_space<vmem>>, vector<1x8x64xf32>,
    %c0_9 = arith.constant 0 : index
    %c0_10 = arith.constant 0 : index
    %10 = vector.load %arg4[%c0_9, %c0_10] : memref<32x64xf32, #tpu.memory_space<vmem>>, vector<32x64xf32>
    %cst_11 = arith.constant dense<0.000000e+00> : vector<8x64xf32>
    %11 = tpu.matmul %1, %10, %cst_11 {dimension_numbers = #tpu.dot_dimension_numbers<[1], [0], [0], [1], [0, 0, 1, 1], [], []>} : vector<8x32xf32>, vector<32x64xf32>, vector<8x64xf32> -> vector<8x64xf32>
    %c0_12 = arith.constant 0 : index
    %c0_13 = arith.constant 0 : index
    %c0_14 = arith.constant 0 : index
    %12 = vector.load %arg9[%c0_12, %c0_13, %c0_14] : memref<1x8x64xf32, #tpu.memory_space<vmem>>, vector<1x8x64xf32>
    %13 = vector.shape_cast %12 : vector<1x8x64xf32> to vector<8x64xf32>
    %14 = vector.shape_cast %11 : vector<8x64xf32> to vector<1x8x64xf32>
    tpu.vector_store %arg9[%c0_12, %c0_13, %c0_14], %14 {strides = array<i32>} : memref<1x8x64xf32, #tpu.memory_space<vmem>>, vector<1x8x64xf32>,
    %c0_15 = arith.constant 0 : index
    %c0_16 = arith.constant 0 : index
    %15 = vector.load %arg6[%c0_15, %c0_16] : memref<32x128xf32, #tpu.memory_space<vmem>>, vector<32x128xf32>
    %cst_17 = arith.constant dense<0.000000e+00> : vector<8x128xf32>
    %16 = tpu.matmul %1, %15, %cst_17 {dimension_numbers = #tpu.dot_dimension_numbers<[1], [0], [0], [1], [0, 0, 1, 1], [], []>} : vector<8x32xf32>, vector<32x128xf32>, vector<8x128xf32> -> vector<8x128xf32>
    %c0_18 = arith.constant 0 : index
    %c0_19 = arith.constant 0 : index
    %17 = vector.load %arg7[%c0_18, %c0_19] : memref<1x128xf32, #tpu.memory_space<vmem>>, vector<1x128xf32>
    %18 = vector.broadcast %17 : vector<1x128xf32> to vector<8x128xf32>
    %19 = arith.addf %16, %18 : vector<8x128xf32>
    %c0_20 = arith.constant 0 : index
    %c0_21 = arith.constant 0 : index
    %c0_22 = arith.constant 0 : index
    %20 = vector.load %arg10[%c0_20, %c0_21, %c0_22] : memref<1x8x128xf32, #tpu.memory_space<vmem>>, vector<1x8x128xf32>
    %21 = vector.shape_cast %20 : vector<1x8x128xf32> to vector<8x128xf32>
    %22 = vector.shape_cast %19 : vector<8x128xf32> to vector<1x8x128xf32>
    tpu.vector_store %arg10[%c0_20, %c0_21, %c0_22], %22 {strides = array<i32>} : memref<1x8x128xf32, #tpu.memory_space<vmem>>, vector<1x8x128xf32>,
    return
  }
  func.func @transform_0(%arg0: i32, %arg1: i32) -> (i32, i32, i32) {
    %c0_i32 = arith.constant 0 : i32
    %c0_i32_0 = arith.constant 0 : i32
    return %arg0, %arg1, %c0_i32 : i32, i32, i32
  }
  func.func @transform_1(%arg0: i32, %arg1: i32) -> (i32, i32) {
    %c0_i32 = arith.constant 0 : i32
    %c0_i32_0 = arith.constant 0 : i32
    %c0_i32_1 = arith.constant 0 : i32
    return %c0_i32, %c0_i32_0 : i32, i32
  }
  func.func @transform_2(%arg0: i32, %arg1: i32) -> (i32, i32) {
    %c0_i32 = arith.constant 0 : i32
    %c0_i32_0 = arith.constant 0 : i32
    %c0_i32_1 = arith.constant 0 : i32
    return %c0_i32, %c0_i32_0 : i32, i32
  }
  func.func @transform_3(%arg0: i32, %arg1: i32) -> (i32, i32) {
    %c0_i32 = arith.constant 0 : i32
    %c0_i32_0 = arith.constant 0 : i32
    %c0_i32_1 = arith.constant 0 : i32
    return %c0_i32, %c0_i32_0 : i32, i32
  }
  func.func @transform_4(%arg0: i32, %arg1: i32) -> (i32, i32) {
    %c0_i32 = arith.constant 0 : i32
    %c0_i32_0 = arith.constant 0 : i32
    %c0_i32_1 = arith.constant 0 : i32
    return %c0_i32, %c0_i32_0 : i32, i32
  }
  func.func @transform_5(%arg0: i32, %arg1: i32) -> (i32, i32) {
    %c0_i32 = arith.constant 0 : i32
    %c0_i32_0 = arith.constant 0 : i32
    %c0_i32_1 = arith.constant 0 : i32
    return %c0_i32, %c0_i32_0 : i32, i32
  }
  func.func @transform_6(%arg0: i32, %arg1: i32) -> (i32, i32, i32) {
    %c0_i32 = arith.constant 0 : i32
    %c0_i32_0 = arith.constant 0 : i32
    return %arg0, %arg1, %c0_i32 : i32, i32, i32
  }
  func.func @transform_7(%arg0: i32, %arg1: i32) -> (i32, i32, i32) {
    %c0_i32 = arith.constant 0 : i32
    %c0_i32_0 = arith.constant 0 : i32
    return %arg0, %arg1, %c0_i32 : i32, i32, i32
  }
  func.func @transform_8(%arg0: i32, %arg1: i32) -> (i32, i32, i32) {
    %c0_i32 = arith.constant 0 : i32
    %c0_i32_0 = arith.constant 0 : i32
    return %arg0, %arg1, %c0_i32 : i32, i32, i32
  }
}

</mosaic_0001>

<llo_original>
// kernel: tpu_custom_call.1
$region0: #{tpu_custom_call.1}
  #allocation0 [shape = 'u32[]', space=smem, size = 0x4, offset = 0x4, fixed_abs, tag = 'smem constant byte address 0x4 - core index']
  #allocation1 [shape = 'u32[144,128]{1,0:T(1,128)}', space=vmem, size = 0x12000, scoped, tag = 'internal scratch']
  %s0 = inlined_call_operand.hbm [shape: f32[2,8,32], index: 0, kind: input, shape index: {}]
  %s1 = inlined_call_operand.hbm [shape: f32[32,64], index: 1, kind: input, shape index: {}]
  %s2 = inlined_call_operand.hbm [shape: f32[32,64], index: 2, kind: input, shape index: {}]
  %s3 = inlined_call_operand.vmem [shape: f32[1,64], index: 3, kind: input, shape index: {}]
  %s4 = inlined_call_operand.hbm [shape: f32[32,128], index: 4, kind: input, shape index: {}]
  %s5 = inlined_call_operand.vmem [shape: f32[1,128], index: 5, kind: input, shape index: {}]
  %s6 = inlined_call_operand.hbm [shape: f32[2,8,64], index: 6, kind: output, shape index: {0}]
  %s7 = inlined_call_operand.hbm [shape: f32[2,8,64], index: 7, kind: output, shape index: {1}]
  %s8 = inlined_call_operand.hbm [shape: f32[2,8,128], index: 8, kind: output, shape index: {2}]
  %9 = xla_tuple %s6, %s7, %s8
  %s10 = sld [smem:[#allocation0]]
  $region89: #{tpu_custom_call.1} parent=0
    _
  %s12 = ssub.s32 1, %s10
  %s13 = scalar_select 0, %s12, %s10
  $region1: #{tpu_custom_call.1} parent=0
    #allocation2 [shape = 'u8[8192]{0}', space=vmem, size = 0x2000, scoped, tag = 'input window, operand 0']
    #allocation3 [shape = 's32[2]{0}', space=sflag, size = 0x8, scoped, tag = 'scoped memory for tpu_custom_call.1']
    #allocation4 [shape = 's32[2]{0}', space=sflag, size = 0x8, scoped, tag = 'scoped memory for tpu_custom_call.1']
    #allocation5 [shape = 'u8[16384]{0}', space=vmem, size = 0x4000, scoped, tag = 'input window, operand 1, single buffered']
    #allocation6 [shape = 's32[1]{0}', space=sflag, size = 0x4, scoped, tag = 'scoped memory for tpu_custom_call.1']
    #allocation7 [shape = 'u8[16384]{0}', space=vmem, size = 0x4000, scoped, tag = 'input window, operand 2, single buffered']
    #allocation8 [shape = 'u8[16384]{0}', space=vmem, size = 0x4000, scoped, tag = 'input window, operand 4, single buffered']
    #allocation9 [shape = 's32[1]{0}', space=sflag, size = 0x4, scoped, tag = 'scoped memory for tpu_custom_call.1']
    #allocation10 [shape = 'u8[8192]{0}', space=vmem, size = 0x2000, scoped, tag = 'output window, operand 0']
    #allocation11 [shape = 'u8[8192]{0}', space=vmem, size = 0x2000, scoped, tag = 'output window, operand 1']
    #allocation12 [shape = 's32[2]{0}', space=sflag, size = 0x8, scoped, tag = 'scoped memory for tpu_custom_call.1']
    #allocation13 [shape = 'u8[8192]{0}', space=vmem, size = 0x2000, scoped, tag = 'output window, operand 2']
    %14 = vsyncpa [#allocation3], 0
    %s15 = scalar_lea.sflag [#allocation3], 1
    %16 = vsyncpa %s15, 0
    %17 = vsyncpa [#allocation6], 0
    %18 = vsyncpa [#allocation9], 0
    %19 = vsyncpa [#allocation4], 0
    %s20 = scalar_lea.sflag [#allocation4], 1
    %21 = vsyncpa %s20, 0
    %22 = vsyncpa [#allocation12], 0
    %s23 = scalar_lea.sflag [#allocation12], 1
    %24 = vsyncpa %s23, 0
    loop: start=0, step=1, limit=4
    $region2: #{tpu_custom_call.1} parent=1 // loop_pre_header
      _
    $region3: #{tpu_custom_call.1} parent=1 // loop_header
      %s26 = sphi 0, %s30
      %p27 = scmp.ge.s32.totalorder %s26, 4
      %s33 = sphi 0, %s45
      %s34 = sphi 0, %s41
      %s35 = sphi 0, %s33
      %s36 = sphi 0, %s34
      %s37 = sphi 0, %s35
      %s38 = sphi 0, %s36
      %s50 = sphi 0, %s52
      %s53 = sphi 0, %s50
      %s54 = sphi 0, %s53
      %s70 = sphi 0, %s54
      %s74 = sphi 0, %s74
      %s76 = sphi 0, %s74
      %s77 = sphi 0, %s76
      %s91 = sphi 0, %s77
      %s95 = sphi 0, %s95
      %s97 = sphi 0, %s95
      %s98 = sphi 0, %s97
      %s112 = sphi 0, %s98
      %s116 = sphi 0, %s116
      %s118 = sphi 0, %s116
      %s119 = sphi 0, %s118
      %s133 = sphi 0, %s119
      %s137 = sphi 0, %s137
      %s139 = sphi 0, %s137
      %s140 = sphi 0, %s139
      %s154 = sphi 0, %s140
      %s158 = sphi 0, %s158
      %s160 = sphi 0, %s158
      %s161 = sphi 0, %s160
      %s175 = sphi 0, %s161
      %s183 = sphi 0, %s185
      %s186 = sphi 0, %s183
      %s187 = sphi 0, %s186
      %s203 = sphi 0, %s187
      %s211 = sphi 0, %s213
      %s214 = sphi 0, %s211
      %s215 = sphi 0, %s214
      %s231 = sphi 0, %s215
      %s239 = sphi 0, %s241
      %s242 = sphi 0, %s239
      %s243 = sphi 0, %s242
      %s259 = sphi 0, %s243
    $region4: #{tpu_custom_call.1} parent=1 // loop_header_branch
      %29 = sbr.rel (%p27) target = $region8
    $region5: #{tpu_custom_call.1} parent=1 // loop_body
      %s31 = ssub.s32 %s26, 1
      %s32 = ssub.s32 %s26, 2
      %s39 = sadd.s32 1, %s34
      %p40 = scmp.ge.s32.totalorder %s39, 1
      %s41 = scalar_select %p40, 0, %s39
      %s42 = sadd.s32 1, %s33
      %s43 = scalar_select %p40, %s42, %s33
      %p44 = scmp.ge.s32.totalorder %s43, 2
      %s45 = scalar_select %p44, 0, %s43
      %s46 = ssub.s32 %s33, %s45
      %s47 = ssub.s32 %s34, %s41
      %s48 = sor.u32 %s46, %s47
      %p49 = scmp.eq.s32.totalorder %s48, 0
      %s51 = sadd.s32 %s50, 1
      %s52 = scalar_select %p49, %s50, %s51
      %p55 = pneg %p49
      %p56 = scmp.eq.s32.totalorder %s26, 1
      %p57 = por %p55, %p56
      %p58 = scmp.ne.s32.totalorder %s50, %s53
      %p59 = scmp.eq.s32.totalorder %s26, 0
      %p60 = por %p58, %p59
      %p61 = scmp.ne.s32.totalorder %s50, %s53
      %p62 = scmp.eq.s32.totalorder %s31, 1
      %p63 = por %p61, %p62
      %p64 = scmp.ne.s32.totalorder %s53, %s54
      %p65 = scmp.eq.s32.totalorder %s31, 0
      %p66 = por %p64, %p65
      %p67 = scmp.ne.s32.totalorder %s53, %s54
      %p68 = scmp.eq.s32.totalorder %s32, 1
      %p69 = por %p67, %p68
      %p71 = scmp.ne.s32.totalorder %s54, %s70
      %p72 = scmp.eq.s32.totalorder %s32, 0
      %p73 = por %p71, %p72
      %s75 = sadd.s32 %s74, 1
      %p78 = scmp.eq.s32.totalorder %s26, 1
      %p79 = scmp.ne.s32.totalorder %s74, %s76
      %p80 = scmp.eq.s32.totalorder %s26, 0
      %p81 = por %p79, %p80
      %p82 = scmp.ne.s32.totalorder %s74, %s76
      %p83 = scmp.eq.s32.totalorder %s31, 1
      %p84 = por %p82, %p83
      %p85 = scmp.ne.s32.totalorder %s76, %s77
      %p86 = scmp.eq.s32.totalorder %s31, 0
      %p87 = por %p85, %p86
      %p88 = scmp.ne.s32.totalorder %s76, %s77
      %p89 = scmp.eq.s32.totalorder %s32, 1
      %p90 = por %p88, %p89
      %p92 = scmp.ne.s32.totalorder %s77, %s91
      %p93 = scmp.eq.s32.totalorder %s32, 0
      %p94 = por %p92, %p93
      %s96 = sadd.s32 %s95, 1
      %p99 = scmp.eq.s32.totalorder %s26, 1
      %p100 = scmp.ne.s32.totalorder %s95, %s97
      %p101 = scmp.eq.s32.totalorder %s26, 0
      %p102 = por %p100, %p101
      %p103 = scmp.ne.s32.totalorder %s95, %s97
      %p104 = scmp.eq.s32.totalorder %s31, 1
      %p105 = por %p103, %p104
      %p106 = scmp.ne.s32.totalorder %s97, %s98
      %p107 = scmp.eq.s32.totalorder %s31, 0
      %p108 = por %p106, %p107
      %p109 = scmp.ne.s32.totalorder %s97, %s98
      %p110 = scmp.eq.s32.totalorder %s32, 1
      %p111 = por %p109, %p110
      %p113 = scmp.ne.s32.totalorder %s98, %s112
      %p114 = scmp.eq.s32.totalorder %s32, 0
      %p115 = por %p113, %p114
      %s117 = sadd.s32 %s116, 1
      %p120 = scmp.eq.s32.totalorder %s26, 1
      %p121 = scmp.ne.s32.totalorder %s116, %s118
      %p122 = scmp.eq.s32.totalorder %s26, 0
      %p123 = por %p121, %p122
      %p124 = scmp.ne.s32.totalorder %s116, %s118
      %p125 = scmp.eq.s32.totalorder %s31, 1
      %p126 = por %p124, %p125
      %p127 = scmp.ne.s32.totalorder %s118, %s119
      %p128 = scmp.eq.s32.totalorder %s31, 0
      %p129 = por %p127, %p128
      %p130 = scmp.ne.s32.totalorder %s118, %s119
      %p131 = scmp.eq.s32.totalorder %s32, 1
      %p132 = por %p130, %p131
      %p134 = scmp.ne.s32.totalorder %s119, %s133
      %p135 = scmp.eq.s32.totalorder %s32, 0
      %p136 = por %p134, %p135
      %s138 = sadd.s32 %s137, 1
      %p141 = scmp.eq.s32.totalorder %s26, 1
      %p142 = scmp.ne.s32.totalorder %s137, %s139
      %p143 = scmp.eq.s32.totalorder %s26, 0
      %p144 = por %p142, %p143
      %p145 = scmp.ne.s32.totalorder %s137, %s139
      %p146 = scmp.eq.s32.totalorder %s31, 1
      %p147 = por %p145, %p146
      %p148 = scmp.ne.s32.totalorder %s139, %s140
      %p149 = scmp.eq.s32.totalorder %s31, 0
      %p150 = por %p148, %p149
      %p151 = scmp.ne.s32.totalorder %s139, %s140
      %p152 = scmp.eq.s32.totalorder %s32, 1
      %p153 = por %p151, %p152
      %p155 = scmp.ne.s32.totalorder %s140, %s154
      %p156 = scmp.eq.s32.totalorder %s32, 0
      %p157 = por %p155, %p156
      %s159 = sadd.s32 %s158, 1
      %p162 = scmp.eq.s32.totalorder %s26, 1
      %p163 = scmp.ne.s32.totalorder %s158, %s160
      %p164 = scmp.eq.s32.totalorder %s26, 0
      %p165 = por %p163, %p164
      %p166 = scmp.ne.s32.totalorder %s158, %s160
      %p167 = scmp.eq.s32.totalorder %s31, 1
      %p168 = por %p166, %p167
      %p169 = scmp.ne.s32.totalorder %s160, %s161
      %p170 = scmp.eq.s32.totalorder %s31, 0
      %p171 = por %p169, %p170
      %p172 = scmp.ne.s32.totalorder %s160, %s161
      %p173 = scmp.eq.s32.totalorder %s32, 1
      %p174 = por %p172, %p173
      %p176 = scmp.ne.s32.totalorder %s161, %s175
      %p177 = scmp.eq.s32.totalorder %s32, 0
      %p178 = por %p176, %p177
      %s179 = ssub.s32 %s33, %s45
      %s180 = ssub.s32 %s34, %s41
      %s181 = sor.u32 %s179, %s180
      %p182 = scmp.eq.s32.totalorder %s181, 0
      %s184 = sadd.s32 %s183, 1
      %s185 = scalar_select %p182, %s183, %s184
      %p188 = pneg %p182
      %p189 = scmp.eq.s32.totalorder %s26, 1
      %p190 = por %p188, %p189
      %p191 = scmp.ne.s32.totalorder %s183, %s186
      %p192 = scmp.eq.s32.totalorder %s26, 0
      %p193 = por %p191, %p192
      %p194 = scmp.ne.s32.totalorder %s183, %s186
      %p195 = scmp.eq.s32.totalorder %s31, 1
      %p196 = por %p194, %p195
      %p197 = scmp.ne.s32.totalorder %s186, %s187
      %p198 = scmp.eq.s32.totalorder %s31, 0
      %p199 = por %p197, %p198
      %p200 = scmp.ne.s32.totalorder %s186, %s187
      %p201 = scmp.eq.s32.totalorder %s32, 1
      %p202 = por %p200, %p201
      %p204 = scmp.ne.s32.totalorder %s187, %s203
      %p205 = scmp.eq.s32.totalorder %s32, 0
      %p206 = por %p204, %p205
      %s207 = ssub.s32 %s33, %s45
      %s208 = ssub.s32 %s34, %s41
      %s209 = sor.u32 %s207, %s208
      %p210 = scmp.eq.s32.totalorder %s209, 0
      %s212 = sadd.s32 %s211, 1
      %s213 = scalar_select %p210, %s211, %s212
      %p216 = pneg %p210
      %p217 = scmp.eq.s32.totalorder %s26, 1
      %p218 = por %p216, %p217
      %p219 = scmp.ne.s32.totalorder %s211, %s214
      %p220 = scmp.eq.s32.totalorder %s26, 0
      %p221 = por %p219, %p220
      %p222 = scmp.ne.s32.totalorder %s211, %s214
      %p223 = scmp.eq.s32.totalorder %s31, 1
      %p224 = por %p222, %p223
      %p225 = scmp.ne.s32.totalorder %s214, %s215
      %p226 = scmp.eq.s32.totalorder %s31, 0
      %p227 = por %p225, %p226
      %p228 = scmp.ne.s32.totalorder %s214, %s215
      %p229 = scmp.eq.s32.totalorder %s32, 1
      %p230 = por %p228, %p229
      %p232 = scmp.ne.s32.totalorder %s215, %s231
      %p233 = scmp.eq.s32.totalorder %s32, 0
      %p234 = por %p232, %p233
      %s235 = ssub.s32 %s33, %s45
      %s236 = ssub.s32 %s34, %s41
      %s237 = sor.u32 %s235, %s236
      %p238 = scmp.eq.s32.totalorder %s237, 0
      %s240 = sadd.s32 %s239, 1
      %s241 = scalar_select %p238, %s239, %s240
      %p244 = pneg %p238
      %p245 = scmp.eq.s32.totalorder %s26, 1
      %p246 = por %p244, %p245
      %p247 = scmp.ne.s32.totalorder %s239, %s242
      %p248 = scmp.eq.s32.totalorder %s26, 0
      %p249 = por %p247, %p248
      %p250 = scmp.ne.s32.totalorder %s239, %s242
      %p251 = scmp.eq.s32.totalorder %s31, 1
      %p252 = por %p250, %p251
      %p253 = scmp.ne.s32.totalorder %s242, %s243
      %p254 = scmp.eq.s32.totalorder %s31, 0
      %p255 = por %p253, %p254
      %p256 = scmp.ne.s32.totalorder %s242, %s243
      %p257 = scmp.eq.s32.totalorder %s32, 1
      %p258 = por %p256, %p257
      %p260 = scmp.ne.s32.totalorder %s243, %s259
      %p261 = scmp.eq.s32.totalorder %s32, 0
      %p262 = por %p260, %p261
      %p263 = scmp.le.s32.totalorder 1, %s26
      %p264 = scmp.lt.s32.totalorder %s26, 3
      %p265 = pnand %p263, %p264
      %p266 = pneg %p265
      // Predicated region
      $region9: #{tpu_custom_call.1} parent=5 // pred_check
        _
      $region10: #{tpu_custom_call.1} parent=5 // pred_check_branch
        %268 = sbr.rel (%p265) target = $region12
      $region11: #{tpu_custom_call.1} parent=5 // pred_region
        %s269 = ssub.s32 %s26, 1
        // Predicated region
        $region13: #{tpu_custom_call.1} parent=11 // pred_check
          %p270 = pneg %p87
        $region14: #{tpu_custom_call.1} parent=11 // pred_check_branch
          %272 = sbr.rel (%p270) target = $region16
        $region15: #{tpu_custom_call.1} parent=11 // pred_region
          %s274 = ssub.s32 512, 512
          %275 = vsyncadd [#allocation6], %s274
          %s276 = sshll.u32 [#allocation5], 4
          %s277 = int_to_ptr.vmem [resolvable:$true] %s276
          %282 = dma.hbm_to_vmem [thread:$0]  %s1, 512, %s277, [#allocation6], 128, 128, 8
        $region16: #{tpu_custom_call.1} parent=11 // pred_fallthru
          _
        // Predicated region
        $region17: #{tpu_custom_call.1} parent=11 // pred_check
          %p283 = pneg %p108
        $region18: #{tpu_custom_call.1} parent=11 // pred_check_branch
          %285 = sbr.rel (%p283) target = $region20
        $region19: #{tpu_custom_call.1} parent=11 // pred_region
          %s287 = ssub.s32 512, 512
          %288 = vsyncadd [#allocation6], %s287
          %s289 = sshll.u32 [#allocation7], 4
          %s290 = int_to_ptr.vmem [resolvable:$true] %s289
          %295 = dma.hbm_to_vmem [thread:$0]  %s2, 512, %s290, [#allocation6], 128, 128, 8
        $region20: #{tpu_custom_call.1} parent=11 // pred_fallthru
          _
        // Predicated region
        $region21: #{tpu_custom_call.1} parent=11 // pred_check
          %p296 = pneg %p129
        $region22: #{tpu_custom_call.1} parent=11 // pred_check_branch
          %298 = sbr.rel (%p296) target = $region24
        $region23: #{tpu_custom_call.1} parent=11 // pred_region
          _
        $region24: #{tpu_custom_call.1} parent=11 // pred_fallthru
          _
        // Predicated region
        $region25: #{tpu_custom_call.1} parent=11 // pred_check
          %p299 = pneg %p150
        $region26: #{tpu_custom_call.1} parent=11 // pred_check_branch
          %301 = sbr.rel (%p299) target = $region28
        $region27: #{tpu_custom_call.1} parent=11 // pred_region
          %s303 = ssub.s32 512, 512
          %304 = vsyncadd [#allocation9], %s303
          %s305 = sshll.u32 [#allocation8], 4
          %s306 = int_to_ptr.vmem [resolvable:$true] %s305
          %311 = dma.hbm_to_vmem [thread:$0]  %s4, 512, %s306, [#allocation9], 128, 128, 8
        $region28: #{tpu_custom_call.1} parent=11 // pred_fallthru
          _
        // Predicated region
        $region29: #{tpu_custom_call.1} parent=11 // pred_check
          %p312 = pneg %p171
        $region30: #{tpu_custom_call.1} parent=11 // pred_check_branch
          %314 = sbr.rel (%p312) target = $region32
        $region31: #{tpu_custom_call.1} parent=11 // pred_region
          _
        $region32: #{tpu_custom_call.1} parent=11 // pred_fallthru
          _
      $region12: #{tpu_custom_call.1} parent=5 // pred_fallthru
        _
      %p315 = scmp.lt.s32.totalorder %s26, 2
      // Predicated region
      $region33: #{tpu_custom_call.1} parent=5 // pred_check
        %p316 = pneg %p315
      $region34: #{tpu_custom_call.1} parent=5 // pred_check_branch
        %318 = sbr.rel (%p316) target = $region36
      $region35: #{tpu_custom_call.1} parent=5 // pred_region
        // Predicated region
        $region37: #{tpu_custom_call.1} parent=35 // pred_check
          %p319 = pneg %p60
        $region38: #{tpu_custom_call.1} parent=35 // pred_check_branch
          %321 = sbr.rel (%p319) target = $region40
        $region39: #{tpu_custom_call.1} parent=35 // pred_region
          %s322 = sand.u32 %s50, 1
          %s323 = scalar_lea.sflag [#allocation3], %s322
          %s324 = sand.u32 %s50, 1
          %s325 = smul.addr %s324, 8
          %s326 = scalar_lea.vmem [#allocation2], %s325
          %s328 = ssub.s32 128, 128
          %329 = vsyncadd %s323, %s328
          %s330 = sadd.s32 %s34, %s33
          %s331 = smul.addr %s330, 128
          %s332 = scalar_lea.hbm %s0, %s331
          %s334 = sshll.u32 %s326, 4
          %s335 = int_to_ptr.vmem [resolvable:$true] %s334
          %337 = dma.hbm_to_vmem [thread:$0]  %s332, 128, %s335, %s323
        $region40: #{tpu_custom_call.1} parent=35 // pred_fallthru
          _
      $region36: #{tpu_custom_call.1} parent=5 // pred_fallthru
        _
      %p338 = scmp.le.s32.totalorder 1, %s26
      %p339 = scmp.lt.s32.totalorder %s26, 3
      %p340 = pnand %p338, %p339
      %p341 = pneg %p340
      // Predicated region
      $region41: #{tpu_custom_call.1} parent=5 // pred_check
        _
      $region42: #{tpu_custom_call.1} parent=5 // pred_check_branch
        %343 = sbr.rel (%p340) target = $region44
      $region43: #{tpu_custom_call.1} parent=5 // pred_region
        %s344 = ssub.s32 %s26, 1
        %s345 = sand.u32 %s53, 1
        %s346 = scalar_lea.sflag [#allocation3], %s345
        %s347 = sand.u32 %s53, 1
        %s348 = smul.addr %s347, 8
        %s349 = scalar_lea.vmem [#allocation2], %s348
        // Predicated region
        $region45: #{tpu_custom_call.1} parent=43 // pred_check
          %p350 = pneg %p66
        $region46: #{tpu_custom_call.1} parent=43 // pred_check_branch
          %352 = sbr.rel (%p350) target = $region48
        $region47: #{tpu_custom_call.1} parent=43 // pred_region
          %353 = dma.done %s346, 128
        $region48: #{tpu_custom_call.1} parent=43 // pred_fallthru
          _
        // Predicated region
        $region49: #{tpu_custom_call.1} parent=43 // pred_check
          %p354 = pneg %p87
        $region50: #{tpu_custom_call.1} parent=43 // pred_check_branch
          %356 = sbr.rel (%p354) target = $region52
        $region51: #{tpu_custom_call.1} parent=43 // pred_region
          %357 = dma.done [#allocation6], 512
        $region52: #{tpu_custom_call.1} parent=43 // pred_fallthru
          _
        // Predicated region
        $region53: #{tpu_custom_call.1} parent=43 // pred_check
          %p358 = pneg %p108
        $region54: #{tpu_custom_call.1} parent=43 // pred_check_branch
          %360 = sbr.rel (%p358) target = $region56
        $region55: #{tpu_custom_call.1} parent=43 // pred_region
          %361 = dma.done [#allocation6], 512
        $region56: #{tpu_custom_call.1} parent=43 // pred_fallthru
          _
        // Predicated region
        $region57: #{tpu_custom_call.1} parent=43 // pred_check
          %p362 = pneg %p150
        $region58: #{tpu_custom_call.1} parent=43 // pred_check_branch
          %364 = sbr.rel (%p362) target = $region60
        $region59: #{tpu_custom_call.1} parent=43 // pred_region
          %365 = dma.done [#allocation9], 512
        $region60: #{tpu_custom_call.1} parent=43 // pred_fallthru
          _
        %s366 = sand.u32 %s53, 1
        %s367 = scalar_lea.sflag [#allocation3], %s366
        %s368 = sand.u32 %s53, 1
        %s369 = smul.addr %s368, 8
        %s370 = scalar_lea.vmem [#allocation2], %s369
        %p371 = pneg %p66
        %p372 = pneg %p63
        %p373 = pneg %p87
        %p374 = pneg %p84
        %p375 = pneg %p108
        %p376 = pneg %p105
        %p377 = pneg %p129
        %p378 = pneg %p126
        %p379 = pneg %p150
        %p380 = pneg %p147
        %p381 = pneg %p171
        %p382 = pneg %p168
        %p383 = pneg %p199
        %p384 = pneg %p196
        %s385 = sand.u32 %s186, 1
        %s386 = scalar_lea.sflag [#allocation4], %s385
        %s387 = sand.u32 %s186, 1
        %s388 = smul.addr %s387, 8
        %s389 = scalar_lea.vmem [#allocation10], %s388
        %p390 = pneg %p227
        %p391 = pneg %p224
        %s392 = sand.u32 %s31, 1
        %s393 = scalar_lea.sflag [#allocation12], %s392
        %s394 = sand.u32 %s214, 1
        %s395 = smul.addr %s394, 8
        %s396 = scalar_lea.vmem [#allocation11], %s395
        %p397 = pneg %p255
        %p398 = pneg %p252
        %s399 = sand.u32 %s31, 1
        %s400 = scalar_lea.sflag [#allocation12], %s399
        %s401 = sand.u32 %s242, 1
        %s402 = smul.addr %s401, 8
        %s403 = scalar_lea.vmem [#allocation13], %s402
        %v404 = vld [vmem:[%s349] sm:$0xff]
        %v405 = vld [vmem:[#allocation5] sm:$0xff]
        %v406 = vld [vmem:[#allocation5 + $0x8] sm:$0xff]
        %v407 = vld [vmem:[#allocation5 + $0x10] sm:$0xff]
        %v408 = vld [vmem:[#allocation5 + $0x18] sm:$0xff]
        %v409 = vld [vmem:[%s3] sm:$0x1]
        %v411 = vlaneseq
        %v412 = vshrl.u32 %v411, 7
        %v413 = vsub.s32 0, %v412
        %v414 = vrot.slane %v409, %v413
        %vm416 = vcmask 261120
        %v418 = vsel %vm416, %v404, 0
        %420 = vmatprep.subr.mxu0 0.0
        %421 = vmatpush1.msra.mxu0 %v405
        %422 = vmatprep.subr.mxu0 0.0
        %423 = vmatpush1.msra.mxu0 %v406
        %424 = vmatprep.subr.mxu0 0.0
        %425 = vmatpush1.msra.mxu0 %v407
        %426 = vmatprep.subr.mxu0 0.0
        %427 = vmatpush1.msra.mxu0 %v408
        %428 = vmatprep.subr.mxu0 0.0
        %429 = vmatpush1.msra.mxu0 0.0
        %430 = vmatprep.subr.mxu0 0.0
        %431 = vmatpush1.msra.mxu0 0.0
        %432 = vmatprep.subr.mxu0 0.0
        %433 = vmatpush1.msra.mxu0 0.0
        %434 = vmatprep.subr.mxu0 0.0
        %435 = vmatpush1.msra.mxu0 0.0
        %436 = vmatprep.subr.mxu0 0.0
        %437 = vmatpush1.msra.mxu0 0.0
        %438 = vmatprep.subr.mxu0 0.0
        %439 = vmatpush1.msra.mxu0 0.0
        %440 = vmatprep.subr.mxu0 0.0
        %441 = vmatpush1.msra.mxu0 0.0
        %442 = vmatprep.subr.mxu0 0.0
        %443 = vmatpush1.msra.mxu0 0.0
        %444 = vmatprep.subr.mxu0 0.0
        %445 = vmatpush1.msra.mxu0 0.0
        %446 = vmatprep.subr.mxu0 0.0
        %447 = vmatpush1.msra.mxu0 0.0
        %448 = vmatprep.subr.mxu0 0.0
        %449 = vmatpush1.msra.mxu0 0.0
        %450 = vmatprep.subr.mxu0 0.0
        %451 = vmatpush1.msra.mxu0 0.0
        %452 = vmatprep.subr.mxu0 0.0
        %453 = vmatpush1.msra.mxu0 0.0
        %454 = vmatprep.subr.mxu0 0.0
        %455 = vmatpush1.msra.mxu0 0.0
        %456 = vmatprep.subr.mxu0 0.0
        %457 = vmatpush1.msra.mxu0 0.0
        %458 = vmatprep.subr.mxu0 0.0
        %459 = vmatpush1.msra.mxu0 0.0
        %460 = vmatprep.subr.mxu0 0.0
        %461 = vmatpush1.msra.mxu0 0.0
        %462 = vmatprep.subr.mxu0 0.0
        %463 = vmatpush1.msra.mxu0 0.0
        %464 = vmatprep.subr.mxu0 0.0
        %465 = vmatpush1.msra.mxu0 0.0
        %466 = vmatprep.subr.mxu0 0.0
        %467 = vmatpush1.msra.mxu0 0.0
        %468 = vmatprep.subr.mxu0 0.0
        %469 = vmatpush1.msra.mxu0 0.0
        %470 = vmatprep.subr.mxu0 0.0
        %471 = vmatpush1.msra.mxu0 0.0
        %472 = vmatprep.subr.mxu0 0.0
        %473 = vmatpush1.msra.mxu0 0.0
        %474 = vmatprep.subr.mxu0 0.0
        %475 = vmatpush1.msra.mxu0 0.0
        %476 = vmatprep.subr.mxu0 0.0
        %477 = vmatpush1.msra.mxu0 0.0
        %478 = vmatprep.subr.mxu0 0.0
        %479 = vmatpush1.msra.mxu0 0.0
        %480 = vmatprep.subr.mxu0 0.0
        %481 = vmatpush1.msra.mxu0 0.0
        %482 = vmatprep.subr.mxu0 0.0
        %483 = vmatpush1.msra.mxu0 0.0
        %484 = vmatprep.mubr.f32.mxu0 0.0
        %485 = vmatmul.mubr.f32.gmra.mrb[0].mxu0 %v418
        %v486 = vpop.f32.mrb[0].mxu0
        %v487 = vadd.f32 %v414, %v486
        %v488 = vpop.f32.mrb[0].mxu0
        %489 = vdwg.mxu0
        %vm490 = vcmask 523264
        %491 = vst.msk [vmem:[%s389] sm:$0xff] %vm490, %v487
        %v492 = vld [vmem:[#allocation7] sm:$0xff]
        %v493 = vld [vmem:[#allocation7 + $0x8] sm:$0xff]
        %v494 = vld [vmem:[#allocation7 + $0x10] sm:$0xff]
        %v495 = vld [vmem:[#allocation7 + $0x18] sm:$0xff]
        %496 = vmatprep.subr.mxu0 0.0
        %497 = vmatpush1.msra.mxu0 %v492
        %498 = vmatprep.subr.mxu0 0.0
        %499 = vmatpush1.msra.mxu0 %v493
        %500 = vmatprep.subr.mxu0 0.0
        %501 = vmatpush1.msra.mxu0 %v494
        %502 = vmatprep.subr.mxu0 0.0
        %503 = vmatpush1.msra.mxu0 %v495
        %504 = vmatprep.subr.mxu0 0.0
        %505 = vmatpush1.msra.mxu0 0.0
        %506 = vmatprep.subr.mxu0 0.0
        %507 = vmatpush1.msra.mxu0 0.0
        %508 = vmatprep.subr.mxu0 0.0
        %509 = vmatpush1.msra.mxu0 0.0
        %510 = vmatprep.subr.mxu0 0.0
        %511 = vmatpush1.msra.mxu0 0.0
        %512 = vmatprep.subr.mxu0 0.0
        %513 = vmatpush1.msra.mxu0 0.0
        %514 = vmatprep.subr.mxu0 0.0
        %515 = vmatpush1.msra.mxu0 0.0
        %516 = vmatprep.subr.mxu0 0.0
        %517 = vmatpush1.msra.mxu0 0.0
        %518 = vmatprep.subr.mxu0 0.0
        %519 = vmatpush1.msra.mxu0 0.0
        %520 = vmatprep.subr.mxu0 0.0
        %521 = vmatpush1.msra.mxu0 0.0
        %522 = vmatprep.subr.mxu0 0.0
        %523 = vmatpush1.msra.mxu0 0.0
        %524 = vmatprep.subr.mxu0 0.0
        %525 = vmatpush1.msra.mxu0 0.0
        %526 = vmatprep.subr.mxu0 0.0
        %527 = vmatpush1.msra.mxu0 0.0
        %528 = vmatprep.subr.mxu0 0.0
        %529 = vmatpush1.msra.mxu0 0.0
        %530 = vmatprep.subr.mxu0 0.0
        %531 = vmatpush1.msra.mxu0 0.0
        %532 = vmatprep.subr.mxu0 0.0
        %533 = vmatpush1.msra.mxu0 0.0
        %534 = vmatprep.subr.mxu0 0.0
        %535 = vmatpush1.msra.mxu0 0.0
        %536 = vmatprep.subr.mxu0 0.0
        %537 = vmatpush1.msra.mxu0 0.0
        %538 = vmatprep.subr.mxu0 0.0
        %539 = vmatpush1.msra.mxu0 0.0
        %540 = vmatprep.subr.mxu0 0.0
        %541 = vmatpush1.msra.mxu0 0.0
        %542 = vmatprep.subr.mxu0 0.0
        %543 = vmatpush1.msra.mxu0 0.0
        %544 = vmatprep.subr.mxu0 0.0
        %545 = vmatpush1.msra.mxu0 0.0
        %546 = vmatprep.subr.mxu0 0.0
        %547 = vmatpush1.msra.mxu0 0.0
        %548 = vmatprep.subr.mxu0 0.0
        %549 = vmatpush1.msra.mxu0 0.0
        %550 = vmatprep.subr.mxu0 0.0
        %551 = vmatpush1.msra.mxu0 0.0
        %552 = vmatprep.subr.mxu0 0.0
        %553 = vmatpush1.msra.mxu0 0.0
        %554 = vmatprep.subr.mxu0 0.0
        %555 = vmatpush1.msra.mxu0 0.0
        %556 = vmatprep.subr.mxu0 0.0
        %557 = vmatpush1.msra.mxu0 0.0
        %558 = vmatprep.subr.mxu0 0.0
        %559 = vmatpush1.msra.mxu0 0.0
        %560 = vmatprep.mubr.f32.mxu0 0.0
        %561 = vmatmul.mubr.f32.gmra.mrb[0].mxu0 %v418
        %v562 = vpop.f32.mrb[0].mxu0
        %v563 = vadd.f32 0.0, %v562
        %v564 = vpop.f32.mrb[0].mxu0
        %565 = vdwg.mxu0
        %566 = vst.msk [vmem:[%s396] sm:$0xff] %vm490, %v563
        %v567 = vld [vmem:[#allocation8] sm:$0xff]
        %v568 = vld [vmem:[#allocation8 + $0x8] sm:$0xff]
        %v569 = vld [vmem:[#allocation8 + $0x10] sm:$0xff]
        %v570 = vld [vmem:[#allocation8 + $0x18] sm:$0xff]
        %v571 = vld [vmem:[%s5] sm:$0x1]
        %v573 = vlaneseq
        %v574 = vshrl.u32 %v573, 7
        %v575 = vsub.s32 0, %v574
        %v576 = vrot.slane %v571, %v575
        %578 = vmatprep.subr.mxu0 0.0
        %579 = vmatpush1.msra.mxu0 %v567
        %580 = vmatprep.subr.mxu0 0.0
        %581 = vmatpush1.msra.mxu0 %v568
        %582 = vmatprep.subr.mxu0 0.0
        %583 = vmatpush1.msra.mxu0 %v569
        %584 = vmatprep.subr.mxu0 0.0
        %585 = vmatpush1.msra.mxu0 %v570
        %586 = vmatprep.subr.mxu0 0.0
        %587 = vmatpush1.msra.mxu0 0.0
        %588 = vmatprep.subr.mxu0 0.0
        %589 = vmatpush1.msra.mxu0 0.0
        %590 = vmatprep.subr.mxu0 0.0
        %591 = vmatpush1.msra.mxu0 0.0
        %592 = vmatprep.subr.mxu0 0.0
        %593 = vmatpush1.msra.mxu0 0.0
        %594 = vmatprep.subr.mxu0 0.0
        %595 = vmatpush1.msra.mxu0 0.0
        %596 = vmatprep.subr.mxu0 0.0
        %597 = vmatpush1.msra.mxu0 0.0
        %598 = vmatprep.subr.mxu0 0.0
        %599 = vmatpush1.msra.mxu0 0.0
        %600 = vmatprep.subr.mxu0 0.0
        %601 = vmatpush1.msra.mxu0 0.0
        %602 = vmatprep.subr.mxu0 0.0
        %603 = vmatpush1.msra.mxu0 0.0
        %604 = vmatprep.subr.mxu0 0.0
        %605 = vmatpush1.msra.mxu0 0.0
        %606 = vmatprep.subr.mxu0 0.0
        %607 = vmatpush1.msra.mxu0 0.0
        %608 = vmatprep.subr.mxu0 0.0
        %609 = vmatpush1.msra.mxu0 0.0
        %610 = vmatprep.subr.mxu0 0.0
        %611 = vmatpush1.msra.mxu0 0.0
        %612 = vmatprep.subr.mxu0 0.0
        %613 = vmatpush1.msra.mxu0 0.0
        %614 = vmatprep.subr.mxu0 0.0
        %615 = vmatpush1.msra.mxu0 0.0
        %616 = vmatprep.subr.mxu0 0.0
        %617 = vmatpush1.msra.mxu0 0.0
        %618 = vmatprep.subr.mxu0 0.0
        %619 = vmatpush1.msra.mxu0 0.0
        %620 = vmatprep.subr.mxu0 0.0
        %621 = vmatpush1.msra.mxu0 0.0
        %622 = vmatprep.subr.mxu0 0.0
        %623 = vmatpush1.msra.mxu0 0.0
        %624 = vmatprep.subr.mxu0 0.0
        %625 = vmatpush1.msra.mxu0 0.0
        %626 = vmatprep.subr.mxu0 0.0
        %627 = vmatpush1.msra.mxu0 0.0
        %628 = vmatprep.subr.mxu0 0.0
        %629 = vmatpush1.msra.mxu0 0.0
        %630 = vmatprep.subr.mxu0 0.0
        %631 = vmatpush1.msra.mxu0 0.0
        %632 = vmatprep.subr.mxu0 0.0
        %633 = vmatpush1.msra.mxu0 0.0
        %634 = vmatprep.subr.mxu0 0.0
        %635 = vmatpush1.msra.mxu0 0.0
        %636 = vmatprep.subr.mxu0 0.0
        %637 = vmatpush1.msra.mxu0 0.0
        %638 = vmatprep.subr.mxu0 0.0
        %639 = vmatpush1.msra.mxu0 0.0
        %640 = vmatprep.subr.mxu0 0.0
        %641 = vmatpush1.msra.mxu0 0.0
        %642 = vmatprep.mubr.f32.mxu0 0.0
        %643 = vmatmul.mubr.f32.gmra.mrb[0].mxu0 %v418
        %v644 = vpop.f32.mrb[0].mxu0
        %v645 = vadd.f32 %v576, %v644
        %v646 = vpop.f32.mrb[0].mxu0
        %647 = vdwg.mxu0
        %648 = vst [vmem:[%s403] sm:$0xff] %v645
        %s649 = sand.u32 %s186, 1
        %s650 = scalar_lea.sflag [#allocation4], %s649
        %s651 = sand.u32 %s186, 1
        %s652 = smul.addr %s651, 8
        %s653 = scalar_lea.vmem [#allocation10], %s652
        %s654 = sand.u32 %s31, 1
        %s655 = scalar_lea.sflag [#allocation12], %s654
        %s656 = sand.u32 %s214, 1
        %s657 = smul.addr %s656, 8
        %s658 = scalar_lea.vmem [#allocation11], %s657
        %s659 = sand.u32 %s31, 1
        %s660 = scalar_lea.sflag [#allocation12], %s659
        %s661 = sand.u32 %s242, 1
        %s662 = smul.addr %s661, 8
        %s663 = scalar_lea.vmem [#allocation13], %s662
        // Predicated region
        $region61: #{tpu_custom_call.1} parent=43 // pred_check
          %p664 = pneg %p196
        $region62: #{tpu_custom_call.1} parent=43 // pred_check_branch
          %666 = sbr.rel (%p664) target = $region64
        $region63: #{tpu_custom_call.1} parent=43 // pred_region
          %s668 = ssub.s32 128, 128
          %669 = vsyncadd %s650, %s668
          %s670 = sadd.s32 %s36, %s35
          %s671 = smul.addr %s670, 128
          %s672 = scalar_lea.hbm %s6, %s671
          %s674 = sshll.u32 %s653, 4
          %s675 = int_to_ptr.vmem [resolvable:$true] %s674
          %677 = dma.vmem_to_hbm [thread:$0]  %s675, 128, %s672, %s650
        $region64: #{tpu_custom_call.1} parent=43 // pred_fallthru
          _
        // Predicated region
        $region65: #{tpu_custom_call.1} parent=43 // pred_check
          %p678 = pneg %p224
        $region66: #{tpu_custom_call.1} parent=43 // pred_check_branch
          %680 = sbr.rel (%p678) target = $region68
        $region67: #{tpu_custom_call.1} parent=43 // pred_region
          %s682 = ssub.s32 128, 128
          %683 = vsyncadd %s655, %s682
          %s684 = sadd.s32 %s36, %s35
          %s685 = smul.addr %s684, 128
          %s686 = scalar_lea.hbm %s7, %s685
          %s688 = sshll.u32 %s658, 4
          %s689 = int_to_ptr.vmem [resolvable:$true] %s688
          %691 = dma.vmem_to_hbm [thread:$0]  %s689, 128, %s686, %s655
        $region68: #{tpu_custom_call.1} parent=43 // pred_fallthru
          _
        // Predicated region
        $region69: #{tpu_custom_call.1} parent=43 // pred_check
          %p692 = pneg %p252
        $region70: #{tpu_custom_call.1} parent=43 // pred_check_branch
          %694 = sbr.rel (%p692) target = $region72
        $region71: #{tpu_custom_call.1} parent=43 // pred_region
          %s696 = ssub.s32 128, 128
          %697 = vsyncadd %s660, %s696
          %s698 = sadd.s32 %s36, %s35
          %s699 = smul.addr %s698, 128
          %s700 = scalar_lea.hbm %s8, %s699
          %s702 = sshll.u32 %s663, 4
          %s703 = int_to_ptr.vmem [resolvable:$true] %s702
          %705 = dma.vmem_to_hbm [thread:$0]  %s703, 128, %s700, %s660
        $region72: #{tpu_custom_call.1} parent=43 // pred_fallthru
          _
      $region44: #{tpu_custom_call.1} parent=5 // pred_fallthru
        _
      %p706 = scmp.le.s32.totalorder 2, %s26
      // Predicated region
      $region73: #{tpu_custom_call.1} parent=5 // pred_check
        %p707 = pneg %p706
      $region74: #{tpu_custom_call.1} parent=5 // pred_check_branch
        %709 = sbr.rel (%p707) target = $region76
      $region75: #{tpu_custom_call.1} parent=5 // pred_region
        %s710 = ssub.s32 %s26, 2
        // Predicated region
        $region77: #{tpu_custom_call.1} parent=75 // pred_check
          %p711 = pneg %p202
        $region78: #{tpu_custom_call.1} parent=75 // pred_check_branch
          %713 = sbr.rel (%p711) target = $region80
        $region79: #{tpu_custom_call.1} parent=75 // pred_region
          %s714 = sand.u32 %s187, 1
          %s715 = scalar_lea.sflag [#allocation4], %s714
          %s716 = sand.u32 %s187, 1
          %s717 = smul.addr %s716, 8
          %s718 = scalar_lea.vmem [#allocation10], %s717
          %719 = dma.done %s715, 128
        $region80: #{tpu_custom_call.1} parent=75 // pred_fallthru
          _
        // Predicated region
        $region81: #{tpu_custom_call.1} parent=75 // pred_check
          %p720 = pneg %p230
        $region82: #{tpu_custom_call.1} parent=75 // pred_check_branch
          %722 = sbr.rel (%p720) target = $region84
        $region83: #{tpu_custom_call.1} parent=75 // pred_region
          %s723 = sand.u32 %s32, 1
          %s724 = scalar_lea.sflag [#allocation12], %s723
          %s725 = sand.u32 %s215, 1
          %s726 = smul.addr %s725, 8
          %s727 = scalar_lea.vmem [#allocation11], %s726
          %728 = dma.done %s724, 128
        $region84: #{tpu_custom_call.1} parent=75 // pred_fallthru
          _
        // Predicated region
        $region85: #{tpu_custom_call.1} parent=75 // pred_check
          %p729 = pneg %p258
        $region86: #{tpu_custom_call.1} parent=75 // pred_check_branch
          %731 = sbr.rel (%p729) target = $region88
        $region87: #{tpu_custom_call.1} parent=75 // pred_region
          %s732 = sand.u32 %s32, 1
          %s733 = scalar_lea.sflag [#allocation12], %s732
          %s734 = sand.u32 %s243, 1
          %s735 = smul.addr %s734, 8
          %s736 = scalar_lea.vmem [#allocation13], %s735
          %737 = dma.done %s733, 128
        $region88: #{tpu_custom_call.1} parent=75 // pred_fallthru
          _
      $region76: #{tpu_custom_call.1} parent=5 // pred_fallthru
        _
    $region6: #{tpu_custom_call.1} parent=1 // loop_footer
      %s30 = sadd.s32 1, %s26
    $region7: #{tpu_custom_call.1} parent=1 // loop_footer_branch
      %25 = sbr.rel target = $region3
    $region8: #{tpu_custom_call.1} parent=1 // loop_exit
      _
    %738 = vsyncpa [#allocation3], 1
    %s739 = scalar_lea.sflag [#allocation3], 1
    %740 = vsyncpa %s739, 1
    %741 = vsyncpa [#allocation6], 1
    %742 = vsyncpa [#allocation9], 1
    %743 = vsyncpa [#allocation4], 1
    %s744 = scalar_lea.sflag [#allocation4], 1
    %745 = vsyncpa %s744, 1
    %746 = vsyncpa [#allocation12], 1
    %s747 = scalar_lea.sflag [#allocation12], 1
    %748 = vsyncpa %s747, 1

</llo_original>
